<compile_context>
chip_gen: v5e
topology: v5e:2x2
jax: 0.10.0
libtpu: 0.0.40
codegen_flags: <defaults>
</compile_context>

<pallas_src>
import jax
import jax.numpy as jnp
from jax import lax
from jax.experimental import pallas as pl
from jax.experimental.pallas import tpu as pltpu

# ------------------------- small synthetic config ---------------------------
B_IMG = 2          # image batch
C_IN = 4           # input channels
IMG = 16           # spatial size
PATCH = 4          # patch size
PATCH_DIM = C_IN * PATCH * PATCH         # 64
SWIN_HIDDEN = 32                         # swin_model.config.hidden_size
PROJ_DIM = 16                            # clip_model.config.projection_dim
B_TXT = 2          # text batch
SEQ = 8            # text sequence length
VOCAB = 64         # vocab size of the text stand-in
TXT_HIDDEN = 32    # hidden size of the text stand-in

# --- packed weight slab layout: (SLAB_ROWS, 128) f32, every block starts on
#     an 8-row boundary, real data lives in lanes [0, PROJ_DIM).
_ROW_W1 = 0        # combined (patch_w @ proj1_w) weight        -> 64 rows
_ROW_TW = 64       # text projection weight (1/SEQ pre-folded)  -> 32 rows
_ROW_W2 = 96       # proj2 weight                               -> 16 rows
_ROW_B1 = 112      # combined bias (patch_b @ proj1_w + proj1_b) -> 1 row
_ROW_TB = 120      # text bias                                   -> 1 row
_ROW_B2 = 128      # proj2 bias                                  -> 1 row
SLAB_ROWS = 136
SLAB_LANES = 128

_VMEM = pl.BlockSpec(memory_space=pltpu.MemorySpace.VMEM)
_SMEM = pl.BlockSpec(memory_space=pltpu.MemorySpace.SMEM)


# ------------------------------ fused kernel --------------------------------
def _swin_clip_fused_kernel(scale_ref,    # SMEM f32[1]: exp(logit_scale)
                            cls_ref,      # VMEM (B_IMG, PATCH_DIM): CLS patch pixels
                            pooled_ref,   # VMEM (B_TXT, TXT_HIDDEN): sum-pooled token embeddings
                            slab_ref,     # VMEM (SLAB_ROWS, 128): packed weights/biases
                            o_ref):       # VMEM (B_IMG, B_TXT)
    # Static, 8-row-aligned views into the single packed weight slab.
    w1 = slab_ref[_ROW_W1:_ROW_W1 + PATCH_DIM, 0:PROJ_DIM]      # (64, 16)
    tw = slab_ref[_ROW_TW:_ROW_TW + TXT_HIDDEN, 0:PROJ_DIM]     # (32, 16)
    w2 = slab_ref[_ROW_W2:_ROW_W2 + PROJ_DIM, 0:PROJ_DIM]       # (16, 16)
    b1 = slab_ref[_ROW_B1:_ROW_B1 + 1, 0:PROJ_DIM]              # (1, 16)
    tb = slab_ref[_ROW_TB:_ROW_TB + 1, 0:PROJ_DIM]              # (1, 16)
    b2 = slab_ref[_ROW_B2:_ROW_B2 + 1, 0:PROJ_DIM]              # (1, 16)

    # --- vision head: the stand-in patch embedding is already folded into w1
    #     (exact: no nonlinearity between the backbone stand-in and proj1).
    #     Linear + ReLU, Linear + ReLU.  bf16 operands, f32 accumulation.
    h = jnp.maximum(
        jnp.dot(cls_ref[...].astype(jnp.bfloat16), w1.astype(jnp.bfloat16),
                preferred_element_type=jnp.float32) + b1, 0.0)
    f = jnp.maximum(
        jnp.dot(h.astype(jnp.bfloat16), w2.astype(jnp.bfloat16),
                preferred_element_type=jnp.float32) + b2, 0.0)

    # --- text features: pooling was done wrapper-side; project to PROJ_DIM.
    #     (1/SEQ of the mean-pool is pre-folded into tw.)
    t = (jnp.dot(pooled_ref[...].astype(jnp.bfloat16), tw.astype(jnp.bfloat16),
                 preferred_element_type=jnp.float32) + tb)

    # --- L2 normalize both feature sets: rsqrt goes to the EUP slot; the tiny
    #     eps avoids NaNs when a post-ReLU row is all zeros.
    f_n = f * lax.rsqrt(jnp.sum(f * f, axis=-1, keepdims=True) + 1e-12)
    t_n = t * lax.rsqrt(jnp.sum(t * t, axis=-1, keepdims=True) + 1e-12)

    # --- similarity: contract the last dim of both operands directly on the
    #     MXU (no in-kernel transpose), then scale by exp(logit_scale).
    sim = lax.dot_general(f_n, t_n, (((1,), (1,)), ((), ())),
                          preferred_element_type=jnp.float32)    # (Bi, Bt)
    # TODO(synk): if B_TXT grows, pad the output lane dim to a multiple of 128
    # (lane-dense vst) and slice in the wrapper; negligible at (2, 2).
    o_ref[...] = scale_ref[0] * sim


# ------------------------------ parameter init -------------------------------
def init_params(key):
    ks = jax.random.split(key, 8)

    def w(k, shape):
        return (jax.random.normal(k, shape, jnp.float32) * 0.02).astype(jnp.float32)

    return dict(
        # swin backbone stand-in (patch embedding)
        patch_w=w(ks[0], (PATCH_DIM, SWIN_HIDDEN)),
        patch_b=jnp.zeros((1, SWIN_HIDDEN), jnp.float32),
        # clip text stand-in
        tok_emb=w(ks[1], (VOCAB, TXT_HIDDEN)),
        text_w=w(ks[2], (TXT_HIDDEN, PROJ_DIM)),
        text_b=jnp.zeros((1, PROJ_DIM), jnp.float32),
        # SWIN_CLIP head (the actual trainable module parts)
        proj1_w=w(ks[3], (SWIN_HIDDEN, PROJ_DIM)),
        proj1_b=w(ks[4], (1, PROJ_DIM)),
        proj2_w=w(ks[5], (PROJ_DIM, PROJ_DIM)),
        proj2_b=w(ks[6], (1, PROJ_DIM)),
        # CLIP default: logit_scale = ln(1/0.07)
        logit_scale=jnp.full((1, 1), jnp.log(1.0 / 0.07), jnp.float32),
    )


def pack_kernel_weights(params):
    """Fold + pack all per-call constant weights into one lane-dense slab.

    In a training loop this should be hoisted out of the step (it only depends
    on the parameters, not on the batch).
    """
    # Exact folding of the (linear) backbone stand-in into the first head Linear.
    combined_w = jnp.dot(params["patch_w"], params["proj1_w"])                 # (64, 16)
    combined_b = jnp.dot(params["patch_b"], params["proj1_w"]) + params["proj1_b"]  # (1, 16)
    tw_scaled = params["text_w"] * (1.0 / SEQ)                                 # mean-pool folded

    slab = jnp.zeros((SLAB_ROWS, SLAB_LANES), jnp.float32)
    slab = slab.at[_ROW_W1:_ROW_W1 + PATCH_DIM, 0:PROJ_DIM].set(combined_w)
    slab = slab.at[_ROW_TW:_ROW_TW + TXT_HIDDEN, 0:PROJ_DIM].set(tw_scaled)
    slab = slab.at[_ROW_W2:_ROW_W2 + PROJ_DIM, 0:PROJ_DIM].set(params["proj2_w"])
    slab = slab.at[_ROW_B1:_ROW_B1 + 1, 0:PROJ_DIM].set(combined_b)
    slab = slab.at[_ROW_TB:_ROW_TB + 1, 0:PROJ_DIM].set(params["text_b"])
    slab = slab.at[_ROW_B2:_ROW_B2 + 1, 0:PROJ_DIM].set(params["proj2_b"])

    # exp(logit_scale) is a per-call scalar constant -> 1-D f32[1] SMEM scalar.
    scale = jnp.exp(params["logit_scale"]).reshape((1,))
    return slab, scale


# ------------------------------- forward pass --------------------------------
@jax.jit
def swin_clip_forward(params, pixel_values, input_ids):
    # layout: pixel_values NCHW (B, C, H, W)
    b = pixel_values.shape[0]
    bt = input_ids.shape[0]

    slab, scale = pack_kernel_weights(params)

    # --- swin backbone stand-in.  Only patch (0,0) feeds sequence position 0
    # of the stand-in, so slice just that patch: (B, C*PATCH*PATCH).
    # TODO(synk): full SwinV2 encoder (windowed attention stages) not replicated.
    cls_patch = pixel_values[:, :, :PATCH, :PATCH].reshape(b, PATCH_DIM)

    # --- clip text stand-in: embedding gather + sum-pool are plain-JAX glue
    # (vocab is tiny here); the 1/SEQ of the mean is folded into the slab.
    # TODO(synk): full CLIP text transformer not replicated; at real vocab
    # sizes the gather should be a scalar-prefetch DMA gather from HBM.
    pooled = jnp.sum(jnp.take(params["tok_emb"], input_ids, axis=0), axis=1)  # (Bt, TXT_HIDDEN)

    # TODO(synk): on v7x, add a ("parallel",) grid over the image batch once
    # B_IMG is non-trivial so both TensorCores are used; gridless is optimal
    # at B_IMG = 2.
    return pl.pallas_call(
        _swin_clip_fused_kernel,
        out_shape=jax.ShapeDtypeStruct((b, bt), jnp.float32),
        in_specs=[_SMEM, _VMEM, _VMEM, _VMEM],
        out_specs=_VMEM,
    )(scale, cls_patch, pooled, slab)                              # (B_img, B_txt)


# ----------------------------------- main -------------------------------------
if __name__ == "__main__":
    key = jax.random.PRNGKey(0)
    k_params, k_pix, k_ids = jax.random.split(key, 3)

    params = init_params(k_params)
    pixel_values = jax.random.normal(k_pix, (B_IMG, C_IN, IMG, IMG), jnp.float32)
    input_ids = jax.random.randint(k_ids, (B_TXT, SEQ), 0, VOCAB, jnp.int32)

    logits = swin_clip_forward(params, pixel_values, input_ids)
    jax.block_until_ready(logits)
    assert logits.shape == (B_IMG, B_TXT)
    assert logits.dtype == jnp.float32
    assert bool(jnp.all(jnp.isfinite(logits)))
    print("KERNEL_OK")
</pallas_src>

<mosaic_0001>
module attributes {stable_mosaic.version = 11 : i64} {
  func.func @_swin_clip_fused_kernel(%arg0: memref<1xf32, #tpu.memory_space<smem>>, %arg1: memref<2x64xf32, #tpu.memory_space<vmem>>, %arg2: memref<2x32xf32, #tpu.memory_space<vmem>>, %arg3: memref<136x128xf32, #tpu.memory_space<vmem>>, %arg4: memref<2x2xf32, #tpu.memory_space<vmem>>) attributes {dimension_semantics = [], scalar_prefetch = 0 : i64, scratch_operands = 0 : i64, tpu.core_type = #tpu.core_type<tc>} {
    %c0 = arith.constant 0 : index
    %c0_0 = arith.constant 0 : index
    %0 = vector.load %arg3[%c0, %c0_0] : memref<136x128xf32, #tpu.memory_space<vmem>>, vector<64x16xf32>
    %c64 = arith.constant 64 : index
    %c0_1 = arith.constant 0 : index
    %1 = vector.load %arg3[%c64, %c0_1] : memref<136x128xf32, #tpu.memory_space<vmem>>, vector<32x16xf32>
    %c96 = arith.constant 96 : index
    %c0_2 = arith.constant 0 : index
    %2 = vector.load %arg3[%c96, %c0_2] : memref<136x128xf32, #tpu.memory_space<vmem>>, vector<16x16xf32>
    %c112 = arith.constant 112 : index
    %c0_3 = arith.constant 0 : index
    %3 = vector.load %arg3[%c112, %c0_3] : memref<136x128xf32, #tpu.memory_space<vmem>>, vector<1x16xf32>
    %c120 = arith.constant 120 : index
    %c0_4 = arith.constant 0 : index
    %4 = vector.load %arg3[%c120, %c0_4] : memref<136x128xf32, #tpu.memory_space<vmem>>, vector<1x16xf32>
    %c128 = arith.constant 128 : index
    %c0_5 = arith.constant 0 : index
    %5 = vector.load %arg3[%c128, %c0_5] : memref<136x128xf32, #tpu.memory_space<vmem>>, vector<1x16xf32>
    %c0_6 = arith.constant 0 : index
    %c0_7 = arith.constant 0 : index
    %6 = vector.load %arg1[%c0_6, %c0_7] : memref<2x64xf32, #tpu.memory_space<vmem>>, vector<2x64xf32>
    %7 = arith.truncf %6 : vector<2x64xf32> to vector<2x64xbf16>
    %8 = arith.truncf %0 : vector<64x16xf32> to vector<64x16xbf16>
    %cst = arith.constant dense<0.000000e+00> : vector<2x16xf32>
    %9 = tpu.matmul %7, %8, %cst {dimension_numbers = #tpu.dot_dimension_numbers<[1], [0], [0], [1], [0, 0, 1, 1], [], []>} : vector<2x64xbf16>, vector<64x16xbf16>, vector<2x16xf32> -> vector<2x16xf32>
    %10 = vector.broadcast %3 : vector<1x16xf32> to vector<2x16xf32>
    %11 = arith.addf %9, %10 : vector<2x16xf32>
    %cst_8 = arith.constant 0.000000e+00 : f32
    %12 = vector.broadcast %cst_8 : f32 to vector<2x16xf32>
    %13 = arith.maximumf %11, %12 : vector<2x16xf32>
    %14 = arith.truncf %13 : vector<2x16xf32> to vector<2x16xbf16>
    %15 = arith.truncf %2 : vector<16x16xf32> to vector<16x16xbf16>
    %cst_9 = arith.constant dense<0.000000e+00> : vector<2x16xf32>
    %16 = tpu.matmul %14, %15, %cst_9 {dimension_numbers = #tpu.dot_dimension_numbers<[1], [0], [0], [1], [0, 0, 1, 1], [], []>} : vector<2x16xbf16>, vector<16x16xbf16>, vector<2x16xf32> -> vector<2x16xf32>
    %17 = vector.broadcast %5 : vector<1x16xf32> to vector<2x16xf32>
    %18 = arith.addf %16, %17 : vector<2x16xf32>
    %cst_10 = arith.constant 0.000000e+00 : f32
    %19 = vector.broadcast %cst_10 : f32 to vector<2x16xf32>
    %20 = arith.maximumf %18, %19 : vector<2x16xf32>
    %c0_11 = arith.constant 0 : index
    %c0_12 = arith.constant 0 : index
    %21 = vector.load %arg2[%c0_11, %c0_12] : memref<2x32xf32, #tpu.memory_space<vmem>>, vector<2x32xf32>
    %22 = arith.truncf %21 : vector<2x32xf32> to vector<2x32xbf16>
    %23 = arith.truncf %1 : vector<32x16xf32> to vector<32x16xbf16>
    %cst_13 = arith.constant dense<0.000000e+00> : vector<2x16xf32>
    %24 = tpu.matmul %22, %23, %cst_13 {dimension_numbers = #tpu.dot_dimension_numbers<[1], [0], [0], [1], [0, 0, 1, 1], [], []>} : vector<2x32xbf16>, vector<32x16xbf16>, vector<2x16xf32> -> vector<2x16xf32>
    %25 = vector.broadcast %4 : vector<1x16xf32> to vector<2x16xf32>
    %26 = arith.addf %24, %25 : vector<2x16xf32>
    %27 = arith.mulf %20, %20 : vector<2x16xf32>
    %cst_14 = arith.constant dense<0.000000e+00> : vector<2xf32>
    %28 = vector.multi_reduction <add>, %27, %cst_14 [1] : vector<2x16xf32> to vector<2xf32>
    %29 = vector.shape_cast %28 : vector<2xf32> to vector<2x1xf32>
    %cst_15 = arith.constant 9.99999996E-13 : f32
    %30 = vector.broadcast %cst_15 : f32 to vector<2x1xf32>
    %31 = arith.addf %29, %30 : vector<2x1xf32>
    %32 = math.rsqrt %31 : vector<2x1xf32>
    %33 = vector.broadcast %32 : vector<2x1xf32> to vector<2x16xf32>
    %34 = arith.mulf %20, %33 : vector<2x16xf32>
    %35 = arith.mulf %26, %26 : vector<2x16xf32>
    %cst_16 = arith.constant dense<0.000000e+00> : vector<2xf32>
    %36 = vector.multi_reduction <add>, %35, %cst_16 [1] : vector<2x16xf32> to vector<2xf32>
    %37 = vector.shape_cast %36 : vector<2xf32> to vector<2x1xf32>
    %cst_17 = arith.constant 9.99999996E-13 : f32
    %38 = vector.broadcast %cst_17 : f32 to vector<2x1xf32>
    %39 = arith.addf %37, %38 : vector<2x1xf32>
    %40 = math.rsqrt %39 : vector<2x1xf32>
    %41 = vector.broadcast %40 : vector<2x1xf32> to vector<2x16xf32>
    %42 = arith.mulf %26, %41 : vector<2x16xf32>
    %cst_18 = arith.constant dense<0.000000e+00> : vector<2x2xf32>
    %43 = tpu.matmul %34, %42, %cst_18 {dimension_numbers = #tpu.dot_dimension_numbers<[1], [1], [0], [0], [0, 0, 1, 0], [], []>} : vector<2x16xf32>, vector<2x16xf32>, vector<2x2xf32> -> vector<2x2xf32>
    %c0_19 = arith.constant 0 : index
    %44 = memref.load %arg0[%c0_19] : memref<1xf32, #tpu.memory_space<smem>>
    %45 = vector.broadcast %44 : f32 to vector<2x2xf32>
    %46 = arith.mulf %45, %43 : vector<2x2xf32>
    %c0_20 = arith.constant 0 : index
    %c0_21 = arith.constant 0 : index
    %47 = vector.load %arg4[%c0_20, %c0_21] : memref<2x2xf32, #tpu.memory_space<vmem>>, vector<2x2xf32>
    tpu.vector_store %arg4[%c0_20, %c0_21], %46 {strides = array<i32>} : memref<2x2xf32, #tpu.memory_space<vmem>>, vector<2x2xf32>,
    return
  }
}

</mosaic_0001>

<llo_original>
// kernel: swin_clip_forward.1
$region0: #{swin_clip_forward.1}
  #allocation0 [shape = 'u32[]', space=smem, size = 0x4, offset = 0x4, fixed_abs, tag = 'smem constant byte address 0x4 - core index']
  #allocation1 [shape = 'u32[72,128]{1,0:T(1,128)}', space=vmem, size = 0x9000, scoped, tag = 'internal scratch']
  #allocation2 [shape = 'f32[1]{0:T(128)S(6)}', space=smem, size = 0x200, scoped, tag = 'scoped memory for swin_clip_forward.1']
  %s0 = inlined_call_operand.<no memory space> [shape: f32[1], index: 0, kind: input, shape index: {}]
  %s1 = inlined_call_operand.vmem [shape: f32[2,64], index: 1, kind: input, shape index: {}]
  %s2 = inlined_call_operand.vmem [shape: f32[2,32], index: 2, kind: input, shape index: {}]
  %s3 = inlined_call_operand.vmem [shape: f32[136,128], index: 3, kind: input, shape index: {}]
  %s4 = inlined_call_operand.hbm [shape: f32[2,2], index: 4, kind: output, shape index: {}]
  %s5 = sld [smem:[#allocation0]]
  $region26: #{swin_clip_forward.1} parent=0
    _
  %s7 = ssub.s32 1, %s5
  %s8 = scalar_select 0, %s7, %s5
  %9 = sst [smem:[#allocation2]] %s0
  $region1: #{swin_clip_forward.1} parent=0
    #allocation3 [shape = 'u8[1024]{0}', space=vmem, size = 0x400, scoped, tag = 'output window, operand 0, single buffered']
    #allocation4 [shape = 's32[1]{0}', space=sflag, size = 0x4, scoped, tag = 'scoped memory for swin_clip_forward.1']
    %10 = vsyncpa [#allocation4], 0
    // Predicated region
    $region2: #{swin_clip_forward.1} parent=1 // pred_check
      _
    $region3: #{swin_clip_forward.1} parent=1 // pred_check_branch
      %12 = sbr.rel (0) target = $region5
    $region4: #{swin_clip_forward.1} parent=1 // pred_region
      _
    $region5: #{swin_clip_forward.1} parent=1 // pred_fallthru
      _
    // Predicated region
    $region6: #{swin_clip_forward.1} parent=1 // pred_check
      _
    $region7: #{swin_clip_forward.1} parent=1 // pred_check_branch
      %14 = sbr.rel (0) target = $region9
    $region8: #{swin_clip_forward.1} parent=1 // pred_region
      _
    $region9: #{swin_clip_forward.1} parent=1 // pred_fallthru
      _
    // Predicated region
    $region10: #{swin_clip_forward.1} parent=1 // pred_check
      _
    $region11: #{swin_clip_forward.1} parent=1 // pred_check_branch
      %16 = sbr.rel (0) target = $region13
    $region12: #{swin_clip_forward.1} parent=1 // pred_region
      _
    $region13: #{swin_clip_forward.1} parent=1 // pred_fallthru
      _
    // Predicated region
    $region14: #{swin_clip_forward.1} parent=1 // pred_check
      _
    $region15: #{swin_clip_forward.1} parent=1 // pred_check_branch
      %18 = sbr.rel (0) target = $region17
    $region16: #{swin_clip_forward.1} parent=1 // pred_region
      _
    $region17: #{swin_clip_forward.1} parent=1 // pred_fallthru
      _
    %v20 = vld [vmem:[%s3] sm:$0xff]
    %v21 = vld [vmem:[%s3 + $0x8] sm:$0xff]
    %v22 = vld [vmem:[%s3 + $0x10] sm:$0xff]
    %v23 = vld [vmem:[%s3 + $0x18] sm:$0xff]
    %v24 = vld [vmem:[%s3 + $0x20] sm:$0xff]
    %v25 = vld [vmem:[%s3 + $0x28] sm:$0xff]
    %v26 = vld [vmem:[%s3 + $0x30] sm:$0xff]
    %v27 = vld [vmem:[%s3 + $0x38] sm:$0xff]
    %v28 = vld [vmem:[%s3 + $0x40] sm:$0xff]
    %v29 = vld [vmem:[%s3 + $0x48] sm:$0xff]
    %v30 = vld [vmem:[%s3 + $0x50] sm:$0xff]
    %v31 = vld [vmem:[%s3 + $0x58] sm:$0xff]
    %v32 = vld [vmem:[%s3 + $0x60] sm:$0xff]
    %v33 = vld [vmem:[%s3 + $0x68] sm:$0xff]
    %v34 = vld [vmem:[%s3 + $0x70] sm:$0x1]
    %v35 = vld [vmem:[%s3 + $0x78] sm:$0x1]
    %v36 = vld [vmem:[%s3 + $0x80] sm:$0x1]
    %v37 = vld [vmem:[%s1] sm:$0x3]
    %v38 = vpack.c.bf16 %v37, %v37
    %v39 = vpack.c.bf16 %v21, %v20
    %v40 = vpack.c.bf16 %v23, %v22
    %v41 = vpack.c.bf16 %v25, %v24
    %v42 = vpack.c.bf16 %v27, %v26
    %v43 = vperm.slane %v34, 0
    %vm44 = vcmask 523264
    %v46 = vsel %vm44, %v38, 0
    %48 = vmatpush.bf16.msra.mxu0 0
    %49 = vmatpush.bf16.msra.mxu0 0
    %50 = vmatpush.bf16.msra.mxu0 0
    %51 = vmatpush.bf16.msra.mxu0 0
    %52 = vmatpush.bf16.msra.mxu0 %v42
    %53 = vmatpush.bf16.msra.mxu0 %v41
    %54 = vmatpush.bf16.msra.mxu0 %v40
    %55 = vmatpush.bf16.msra.mxu0 %v39
    %56 = vmatmul.bf16.gmra.mxu0 %v46
    %v57 = vpop.f32.mrf.mxu0
    %v58 = vadd.f32 %v43, %v57
    %v59 = vpop.f32.mrf.mxu0
    %60 = vdwg.mxu0
    %v61 = vmax.f32 %v58, 0.0
    %v62 = vpack.c.bf16 %v61, %v61
    %v63 = vpack.c.bf16 %v33, %v32
    %v64 = vperm.slane %v36, 0
    %vm65 = vcmask 130048
    %v67 = vsel %vm65, %v62, 0
    %69 = vmatpush.bf16.msra.mxu0 0
    %70 = vmatpush.bf16.msra.mxu0 0
    %71 = vmatpush.bf16.msra.mxu0 0
    %72 = vmatpush.bf16.msra.mxu0 0
    %73 = vmatpush.bf16.msra.mxu0 0
    %74 = vmatpush.bf16.msra.mxu0 0
    %75 = vmatpush.bf16.msra.mxu0 0
    %76 = vmatpush.bf16.msra.mxu0 %v63
    %77 = vmatmul.bf16.gmra.mxu0 %v67
    %v78 = vpop.f32.mrf.mxu0
    %v79 = vadd.f32 %v64, %v78
    %v80 = vpop.f32.mrf.mxu0
    %81 = vdwg.mxu0
    %v82 = vmax.f32 %v79, 0.0
    %v83 = vld [vmem:[%s2] sm:$0x3]
    %v84 = vpack.c.bf16 %v83, %v83
    %v85 = vpack.c.bf16 %v29, %v28
    %v86 = vpack.c.bf16 %v31, %v30
    %v87 = vperm.slane %v35, 0
    %vm88 = vcmask 261120
    %v90 = vsel %vm88, %v84, 0
    %92 = vmatpush.bf16.msra.mxu0 0
    %93 = vmatpush.bf16.msra.mxu0 0
    %94 = vmatpush.bf16.msra.mxu0 0
    %95 = vmatpush.bf16.msra.mxu0 0
    %96 = vmatpush.bf16.msra.mxu0 0
    %97 = vmatpush.bf16.msra.mxu0 0
    %98 = vmatpush.bf16.msra.mxu0 %v86
    %99 = vmatpush.bf16.msra.mxu0 %v85
    %100 = vmatmul.bf16.gmra.mxu0 %v90
    %v101 = vpop.f32.mrf.mxu0
    %v102 = vadd.f32 %v87, %v101
    %v103 = vpop.f32.mrf.mxu0
    %104 = vdwg.mxu0
    %v105 = vmul.f32 %v82, %v82
    %vm106 = vcmask 123904
    %v107 = vsel %vm106, %v105, 0.0
    %108 = vadd.xlane.f32.xlu0 %v107
    %v109 = vpop.xlane.xlu0 %108
    %v110 = vadd.f32 %v109, 1e-12
    %v111 = vrsqrt.pop %v110
    %v112 = vmul.f32 %v111, %v110
    %v113 = vmul.f32 %v112, %v111
    %v114 = vmul.f32 0.5, %v113
    %v115 = vsub.f32 1.5, %v114
    %v116 = vmul.f32 %v111, %v115
    %vm117 = vweird.f32 %v110
    %vm118 = vweird.f32 %v111
    %vm119 = vmor %vm117, %vm118
    %v120 = vsel %vm119, %v111, %v116
    %v121 = vmul.f32 %v82, %v120
    %v122 = vmul.f32 %v102, %v102
    %v123 = vsel %vm106, %v122, 0.0
    %124 = vadd.xlane.f32.xlu0 %v123
    %v125 = vpop.xlane.xlu0 %124
    %v126 = vadd.f32 %v125, 1e-12
    %v127 = vrsqrt.pop %v126
    %v128 = vmul.f32 %v127, %v126
    %v129 = vmul.f32 %v128, %v127
    %v130 = vmul.f32 0.5, %v129
    %v131 = vsub.f32 1.5, %v130
    %v132 = vmul.f32 %v127, %v131
    %vm133 = vweird.f32 %v126
    %vm134 = vweird.f32 %v127
    %vm135 = vmor %vm133, %vm134
    %v136 = vsel %vm135, %v127, %v132
    %v137 = vmul.f32 %v102, %v136
    %v139 = vsel %vm65, %v121, 0
    %v142 = vsel %vm65, %v137, 0
    %144 = vmatpush.xpose.msra.mxu0 0.0
    %145 = vmatpush.xpose.msra.mxu0 0.0
    %146 = vmatpush.xpose.msra.mxu0 0.0
    %147 = vmatpush.xpose.msra.mxu0 0.0
    %148 = vmatpush.xpose.msra.mxu0 0.0
    %149 = vmatpush.xpose.msra.mxu0 0.0
    %150 = vmatpush.xpose.msra.mxu0 0.0
    %151 = vmatpush.xpose.msra.mxu0 0.0
    %152 = vmatpush.xpose.msra.mxu0 0.0
    %153 = vmatpush.xpose.msra.mxu0 0.0
    %154 = vmatpush.xpose.msra.mxu0 0.0
    %155 = vmatpush.xpose.msra.mxu0 0.0
    %156 = vmatpush.xpose.msra.mxu0 0.0
    %157 = vmatpush.xpose.msra.mxu0 0.0
    %158 = vmatpush.xpose.msra.mxu0 0.0
    %159 = vmatpush.xpose.msra.mxu0 %v142
    %160 = vmatmul.f32.gmra.mxu0 %v139
    %v161 = vpop.f32.mrf.mxu0
    %v162 = vadd.f32 0.0, %v161
    %163 = vdwg.mxu0
    %s164 = sld [smem:[#allocation2]]
    %v165 = vstv %s164
    %v166 = vmul.f32 %v165, %v162
    %vm167 = vcmask 9216
    %168 = vst.msk [vmem:[#allocation3] sm:$0x3] %vm167, %v166
    // Predicated region
    $region18: #{swin_clip_forward.1} parent=1 // pred_check
      _
    $region19: #{swin_clip_forward.1} parent=1 // pred_check_branch
      %170 = sbr.rel (0) target = $region21
    $region20: #{swin_clip_forward.1} parent=1 // pred_region
      %172 = vsyncadd [#allocation4], 0
      %s174 = sshll.u32 [#allocation3], 4
      %s175 = int_to_ptr.vmem [resolvable:$true] %s174
      %s176 = sshll.u32 %s4, 4
      %s177 = int_to_ptr.hbm [resolvable:$true] %s176
      %179 = dma.vmem_to_hbm [thread:$0]  %s175, 32, %s177, [#allocation4]
    $region21: #{swin_clip_forward.1} parent=1 // pred_fallthru
      _
    // Predicated region
    $region22: #{swin_clip_forward.1} parent=1 // pred_check
      _
    $region23: #{swin_clip_forward.1} parent=1 // pred_check_branch
      %181 = sbr.rel (0) target = $region25
    $region24: #{swin_clip_forward.1} parent=1 // pred_region
      %183 = dma.done [#allocation4], 32
    $region25: #{swin_clip_forward.1} parent=1 // pred_fallthru
      _
    %184 = vsyncpa [#allocation4], 1

</llo_original>
